<compile_context>
chip_gen: v5e
topology: v5e:2x2
jax: 0.10.0
libtpu: 0.0.40
codegen_flags: <defaults>
</compile_context>

<pallas_src>
import functools

import jax
import jax.numpy as jnp
from jax import lax
from jax.experimental import pallas as pl
from jax.experimental.pallas import tpu as pltpu

D_IN = 256   # latent dim
D_H = 128    # hidden dim
D_OUT = 2    # output dim


def generator_kernel(x_ref, w1_ref, b1_ref, w2_ref, b2_ref, w3_ref, b3_ref, ot_ref):
    # x arrives f32 straight from HBM; cast to bf16 in-kernel (VPU work hidden
    # under DMA/MXU) so the wrapper never materializes a cast copy of x.
    x = x_ref[...].astype(jnp.bfloat16)                                   # (bm, 256)

    h1 = jnp.dot(x, w1_ref[...], preferred_element_type=jnp.float32) + b1_ref[...]
    h1 = jnp.tanh(h1)                                                     # (bm, 128) f32

    h2 = jnp.dot(h1.astype(jnp.bfloat16), w2_ref[...],
                 preferred_element_type=jnp.float32) + b2_ref[...]
    h2 = jnp.tanh(h2)                                                     # (bm, 128) f32

    # fc3 emitted transposed:  W3 (2,128) · h2(bm,128)^T -> (2, bm).
    # Batch sits on the lane axis -> fully lane-dense, unmasked stores, only
    # 8 useful bytes/row ever written back to HBM.
    y_t = lax.dot_general(w3_ref[...], h2.astype(jnp.bfloat16),
                          dimension_numbers=(((1,), (1,)), ((), ())),
                          preferred_element_type=jnp.float32)             # (2, bm) f32
    ot_ref[...] = y_t + b3_ref[...]                                       # b3: (2, 1)


def _round_up(n, m):
    return (n + m - 1) // m * m


def _choose_bm(batch, bm_max):
    """Batch tile size.

    * batch <= 256: a single full-array tile (block == full dims, no alignment
      constraint, no padding).
    * batch  > 256: a multiple-of-128 tile (lane-dense transposed output,
      f32-sublane-aligned input) sized so there are at least 2 grid tiles,
      letting the 'parallel' batch axis shard across both v7x TensorCores.
    The grid uses cdiv, so the last tile may be partial (masked by Pallas).
    """
    if batch <= 256:
        return batch
    half = _round_up(-(-batch // 2), 128)
    return max(128, min(bm_max, half))


@functools.partial(jax.jit, static_argnames=("bm",))
def generator_forward(x, params, *, bm=2048):
    """x: (B, 256) float32. Returns (B, 2) float32 (nn.Linear/Tanh semantics,
    bf16 MXU inputs with f32 accumulation)."""
    B, d_in = x.shape
    assert d_in == D_IN, d_in

    bm_eff = _choose_bm(B, bm)
    num_tiles = pl.cdiv(B, bm_eff)

    # Weights in bf16 for the MXU (tiny, negligible traffic); biases stay f32.
    w1 = params["w1t"].astype(jnp.bfloat16)            # (256, 128)  = fc1.weight.T
    w2 = params["w2t"].astype(jnp.bfloat16)            # (128, 128)  = fc2.weight.T
    w3 = params["w3"].astype(jnp.bfloat16)             # (2, 128)    = fc3.weight (PyTorch layout)
    b1 = params["b1"].astype(jnp.float32)              # (1, 128)
    b2 = params["b2"].astype(jnp.float32)              # (1, 128)
    b3 = params["b3"].astype(jnp.float32).reshape(D_OUT, 1)   # (2, 1) -> broadcast over lanes

    flops = 2 * B * (D_IN * D_H + D_H * D_H + D_H * D_OUT)
    bytes_accessed = (B * D_IN * 4 + B * D_OUT * 4                       # x read, y write
                      + 2 * (D_IN * D_H + D_H * D_H + D_OUT * D_H)       # bf16 weights
                      + 4 * (2 * D_H + D_OUT))                           # f32 biases

    out_t = pl.pallas_call(
        generator_kernel,
        out_shape=jax.ShapeDtypeStruct((D_OUT, B), jnp.float32),
        grid_spec=pltpu.PrefetchScalarGridSpec(
            num_scalar_prefetch=0,
            grid=(num_tiles,),
            in_specs=[
                pl.BlockSpec((bm_eff, D_IN), lambda i: (i, 0)),   # x tile (f32, cast in-kernel)
                pl.BlockSpec((D_IN, D_H), lambda i: (0, 0)),      # w1 (resident)
                pl.BlockSpec((1, D_H), lambda i: (0, 0)),         # b1
                pl.BlockSpec((D_H, D_H), lambda i: (0, 0)),       # w2
                pl.BlockSpec((1, D_H), lambda i: (0, 0)),         # b2
                pl.BlockSpec((D_OUT, D_H), lambda i: (0, 0)),     # w3 (PyTorch (out,in) layout)
                pl.BlockSpec((D_OUT, 1), lambda i: (0, 0)),       # b3 as a column
            ],
            out_specs=pl.BlockSpec((D_OUT, bm_eff), lambda i: (0, i)),   # lane-dense (2, bm)
        ),
        compiler_params=pltpu.CompilerParams(
            dimension_semantics=("parallel",),   # batch tiles shard across TCs on v7x
            vmem_limit_bytes=32 << 20,           # headroom for bm=2048 f32 x tiles on v5e
        ),
        cost_estimate=pl.CostEstimate(
            flops=flops,
            transcendentals=2 * B * D_H,
            bytes_accessed=bytes_accessed,
        ),
    )(x, w1, b1, w2, b2, w3, b3)

    # Tiny epilogue: (2, B) -> (B, 2); only 8 bytes/row.
    return out_t.T


def init_params(key):
    """Deterministic PyTorch-style (uniform +-1/sqrt(fan_in)) init for the 3 Linears."""
    def uniform(k, shape, fan_in):
        bound = 1.0 / jnp.sqrt(jnp.float32(fan_in))
        return jax.random.uniform(k, shape, jnp.float32, -bound, bound)

    k1w, k1b, k2w, k2b, k3w, k3b = jax.random.split(key, 6)
    return {
        "w1t": uniform(k1w, (D_IN, D_H), D_IN),    # fc1.weight.T
        "b1":  uniform(k1b, (1, D_H), D_IN),
        "w2t": uniform(k2w, (D_H, D_H), D_H),      # fc2.weight.T
        "b2":  uniform(k2b, (1, D_H), D_H),
        "w3":  uniform(k3w, (D_OUT, D_H), D_H),    # fc3.weight (out, in)
        "b3":  uniform(k3b, (1, D_OUT), D_H),
    }


def generator_reference(x, params, compute_dtype=jnp.float32):
    """Pure-JAX reference; compute_dtype mirrors the kernel's matmul input precision."""
    cd = compute_dtype
    h1 = jnp.tanh(jnp.dot(x.astype(cd), params["w1t"].astype(cd),
                          preferred_element_type=jnp.float32) + params["b1"])
    h2 = jnp.tanh(jnp.dot(h1.astype(cd), params["w2t"].astype(cd),
                          preferred_element_type=jnp.float32) + params["b2"])
    return jnp.dot(h2.astype(cd), params["w3"].astype(cd).T,
                   preferred_element_type=jnp.float32) + params["b3"]


if __name__ == "__main__":
    key = jax.random.PRNGKey(0)
    k_params, k_x, k_x2 = jax.random.split(key, 3)

    params = init_params(k_params)

    # Small batch: single full-array tile path.
    x_small = jax.random.normal(k_x, (8, D_IN), jnp.float32)
    out_small = jax.block_until_ready(generator_forward(x_small, params))
    assert out_small.shape == (8, D_OUT), out_small.shape
    ref_bf16 = generator_reference(x_small, params, jnp.bfloat16)
    ref_f32 = generator_reference(x_small, params, jnp.float32)
    assert jnp.allclose(out_small, ref_bf16, atol=3e-3, rtol=3e-3), "mismatch vs bf16 reference"
    assert jnp.allclose(out_small, ref_f32, atol=3e-2, rtol=3e-2), "mismatch vs f32 reference"

    # Medium batch: multi-tile path with a partial last block
    # (exercises the cdiv grid, masked output writes and the parallel axis split).
    x_med = jax.random.normal(k_x2, (300, D_IN), jnp.float32)
    out_med = jax.block_until_ready(generator_forward(x_med, params))
    assert out_med.shape == (300, D_OUT), out_med.shape
    ref_bf16_m = generator_reference(x_med, params, jnp.bfloat16)
    assert jnp.allclose(out_med, ref_bf16_m, atol=3e-3, rtol=3e-3), "mismatch vs bf16 reference (multi-tile)"

    print("KERNEL_OK")
</pallas_src>

<mosaic_0001>
module attributes {stable_mosaic.version = 11 : i64} {
  func.func @generator_kernel(%arg0: i32, %arg1: memref<8x256xf32, #tpu.memory_space<vmem>>, %arg2: memref<256x128xbf16, #tpu.memory_space<vmem>>, %arg3: memref<1x128xf32, #tpu.memory_space<vmem>>, %arg4: memref<128x128xbf16, #tpu.memory_space<vmem>>, %arg5: memref<1x128xf32, #tpu.memory_space<vmem>>, %arg6: memref<2x128xbf16, #tpu.memory_space<vmem>>, %arg7: memref<2x1xf32, #tpu.memory_space<vmem>>, %arg8: memref<2x8xf32, #tpu.memory_space<vmem>>) attributes {dimension_semantics = [#tpu.dimension_semantics<parallel>], iteration_bounds = array<i64: 1>, scalar_prefetch = 0 : i64, scratch_operands = 0 : i64, tpu.core_type = #tpu.core_type<tc>, window_params = [{transform_indices = @transform_0, window_bounds = array<i64: 8, 256>}, {pipeline_mode = #tpu.pipeline_mode<synchronous>, transform_indices = @transform_1, window_bounds = array<i64: 256, 128>}, {pipeline_mode = #tpu.pipeline_mode<synchronous>, transform_indices = @transform_2, window_bounds = array<i64: 1, 128>}, {pipeline_mode = #tpu.pipeline_mode<synchronous>, transform_indices = @transform_3, window_bounds = array<i64: 128, 128>}, {pipeline_mode = #tpu.pipeline_mode<synchronous>, transform_indices = @transform_4, window_bounds = array<i64: 1, 128>}, {pipeline_mode = #tpu.pipeline_mode<synchronous>, transform_indices = @transform_5, window_bounds = array<i64: 2, 128>}, {pipeline_mode = #tpu.pipeline_mode<synchronous>, transform_indices = @transform_6, window_bounds = array<i64: 2, 1>}, {transform_indices = @transform_7, window_bounds = array<i64: 2, 8>}]} {
    %c0 = arith.constant 0 : index
    %c0_0 = arith.constant 0 : index
    %0 = vector.load %arg1[%c0, %c0_0] : memref<8x256xf32, #tpu.memory_space<vmem>>, vector<8x256xf32>
    %1 = arith.truncf %0 : vector<8x256xf32> to vector<8x256xbf16>
    %c0_1 = arith.constant 0 : index
    %c0_2 = arith.constant 0 : index
    %2 = vector.load %arg2[%c0_1, %c0_2] : memref<256x128xbf16, #tpu.memory_space<vmem>>, vector<256x128xbf16>
    %cst = arith.constant dense<0.000000e+00> : vector<8x128xf32>
    %3 = tpu.matmul %1, %2, %cst {dimension_numbers = #tpu.dot_dimension_numbers<[1], [0], [0], [1], [0, 0, 1, 1], [], []>} : vector<8x256xbf16>, vector<256x128xbf16>, vector<8x128xf32> -> vector<8x128xf32>
    %c0_3 = arith.constant 0 : index
    %c0_4 = arith.constant 0 : index
    %4 = vector.load %arg3[%c0_3, %c0_4] : memref<1x128xf32, #tpu.memory_space<vmem>>, vector<1x128xf32>
    %5 = vector.broadcast %4 : vector<1x128xf32> to vector<8x128xf32>
    %6 = arith.addf %3, %5 : vector<8x128xf32>
    %7 = math.tanh %6 : vector<8x128xf32>
    %8 = arith.truncf %7 : vector<8x128xf32> to vector<8x128xbf16>
    %c0_5 = arith.constant 0 : index
    %c0_6 = arith.constant 0 : index
    %9 = vector.load %arg4[%c0_5, %c0_6] : memref<128x128xbf16, #tpu.memory_space<vmem>>, vector<128x128xbf16>
    %cst_7 = arith.constant dense<0.000000e+00> : vector<8x128xf32>
    %10 = tpu.matmul %8, %9, %cst_7 {dimension_numbers = #tpu.dot_dimension_numbers<[1], [0], [0], [1], [0, 0, 1, 1], [], []>} : vector<8x128xbf16>, vector<128x128xbf16>, vector<8x128xf32> -> vector<8x128xf32>
    %c0_8 = arith.constant 0 : index
    %c0_9 = arith.constant 0 : index
    %11 = vector.load %arg5[%c0_8, %c0_9] : memref<1x128xf32, #tpu.memory_space<vmem>>, vector<1x128xf32>
    %12 = vector.broadcast %11 : vector<1x128xf32> to vector<8x128xf32>
    %13 = arith.addf %10, %12 : vector<8x128xf32>
    %14 = math.tanh %13 : vector<8x128xf32>
    %c0_10 = arith.constant 0 : index
    %c0_11 = arith.constant 0 : index
    %15 = vector.load %arg6[%c0_10, %c0_11] : memref<2x128xbf16, #tpu.memory_space<vmem>>, vector<2x128xbf16>
    %16 = arith.truncf %14 : vector<8x128xf32> to vector<8x128xbf16>
    %cst_12 = arith.constant dense<0.000000e+00> : vector<2x8xf32>
    %17 = tpu.matmul %15, %16, %cst_12 {dimension_numbers = #tpu.dot_dimension_numbers<[1], [1], [0], [0], [0, 0, 1, 0], [], []>} : vector<2x128xbf16>, vector<8x128xbf16>, vector<2x8xf32> -> vector<2x8xf32>
    %c0_13 = arith.constant 0 : index
    %c0_14 = arith.constant 0 : index
    %18 = vector.load %arg7[%c0_13, %c0_14] : memref<2x1xf32, #tpu.memory_space<vmem>>, vector<2x1xf32>
    %19 = vector.broadcast %18 : vector<2x1xf32> to vector<2x8xf32>
    %20 = arith.addf %17, %19 : vector<2x8xf32>
    %c0_15 = arith.constant 0 : index
    %c0_16 = arith.constant 0 : index
    %21 = vector.load %arg8[%c0_15, %c0_16] : memref<2x8xf32, #tpu.memory_space<vmem>>, vector<2x8xf32>
    tpu.vector_store %arg8[%c0_15, %c0_16], %20 {strides = array<i32>} : memref<2x8xf32, #tpu.memory_space<vmem>>, vector<2x8xf32>,
    return
  }
  func.func @transform_0(%arg0: i32) -> (i32, i32) {
    %c0_i32 = arith.constant 0 : i32
    %c0_i32_0 = arith.constant 0 : i32
    return %arg0, %c0_i32 : i32, i32
  }
  func.func @transform_1(%arg0: i32) -> (i32, i32) {
    %c0_i32 = arith.constant 0 : i32
    %c0_i32_0 = arith.constant 0 : i32
    %c0_i32_1 = arith.constant 0 : i32
    return %c0_i32, %c0_i32_0 : i32, i32
  }
  func.func @transform_2(%arg0: i32) -> (i32, i32) {
    %c0_i32 = arith.constant 0 : i32
    %c0_i32_0 = arith.constant 0 : i32
    %c0_i32_1 = arith.constant 0 : i32
    return %c0_i32, %c0_i32_0 : i32, i32
  }
  func.func @transform_3(%arg0: i32) -> (i32, i32) {
    %c0_i32 = arith.constant 0 : i32
    %c0_i32_0 = arith.constant 0 : i32
    %c0_i32_1 = arith.constant 0 : i32
    return %c0_i32, %c0_i32_0 : i32, i32
  }
  func.func @transform_4(%arg0: i32) -> (i32, i32) {
    %c0_i32 = arith.constant 0 : i32
    %c0_i32_0 = arith.constant 0 : i32
    %c0_i32_1 = arith.constant 0 : i32
    return %c0_i32, %c0_i32_0 : i32, i32
  }
  func.func @transform_5(%arg0: i32) -> (i32, i32) {
    %c0_i32 = arith.constant 0 : i32
    %c0_i32_0 = arith.constant 0 : i32
    %c0_i32_1 = arith.constant 0 : i32
    return %c0_i32, %c0_i32_0 : i32, i32
  }
  func.func @transform_6(%arg0: i32) -> (i32, i32) {
    %c0_i32 = arith.constant 0 : i32
    %c0_i32_0 = arith.constant 0 : i32
    %c0_i32_1 = arith.constant 0 : i32
    return %c0_i32, %c0_i32_0 : i32, i32
  }
  func.func @transform_7(%arg0: i32) -> (i32, i32) {
    %c0_i32 = arith.constant 0 : i32
    %c0_i32_0 = arith.constant 0 : i32
    return %c0_i32, %arg0 : i32, i32
  }
}

</mosaic_0001>

<llo_original>
// kernel: generator_forward.1
$region0: #{generator_forward.1}
  #allocation0 [shape = 'u32[]', space=smem, size = 0x4, offset = 0x4, fixed_abs, tag = 'smem constant byte address 0x4 - core index']
  #allocation1 [shape = 'u32[72,128]{1,0:T(1,128)}', space=vmem, size = 0x9000, scoped, tag = 'internal scratch']
  %s0 = inlined_call_operand.vmem [shape: f32[8,256], index: 0, kind: input, shape index: {}]
  %s1 = inlined_call_operand.vmem [shape: bf16[256,128], index: 1, kind: input, shape index: {}]
  %s2 = inlined_call_operand.vmem [shape: f32[1,128], index: 2, kind: input, shape index: {}]
  %s3 = inlined_call_operand.vmem [shape: bf16[128,128], index: 3, kind: input, shape index: {}]
  %s4 = inlined_call_operand.vmem [shape: f32[1,128], index: 4, kind: input, shape index: {}]
  %s5 = inlined_call_operand.vmem [shape: bf16[2,128], index: 5, kind: input, shape index: {}]
  %s6 = inlined_call_operand.vmem [shape: f32[2,1], index: 6, kind: input, shape index: {}]
  %s7 = inlined_call_operand.hbm [shape: f32[2,8], index: 7, kind: output, shape index: {}]
  %s8 = sld [smem:[#allocation0]]
  $region38: #{generator_forward.1} parent=0
    _
  %s10 = ssub.s32 1, %s8
  %s11 = scalar_select 0, %s10, %s8
  $region1: #{generator_forward.1} parent=0
    #allocation2 [shape = 'u8[1024]{0}', space=vmem, size = 0x400, scoped, tag = 'output window, operand 0, single buffered']
    #allocation3 [shape = 's32[1]{0}', space=sflag, size = 0x4, scoped, tag = 'scoped memory for generator_forward.1']
    %12 = vsyncpa [#allocation3], 0
    // Predicated region
    $region2: #{generator_forward.1} parent=1 // pred_check
      _
    $region3: #{generator_forward.1} parent=1 // pred_check_branch
      %14 = sbr.rel (0) target = $region5
    $region4: #{generator_forward.1} parent=1 // pred_region
      _
    $region5: #{generator_forward.1} parent=1 // pred_fallthru
      _
    // Predicated region
    $region6: #{generator_forward.1} parent=1 // pred_check
      _
    $region7: #{generator_forward.1} parent=1 // pred_check_branch
      %16 = sbr.rel (0) target = $region9
    $region8: #{generator_forward.1} parent=1 // pred_region
      _
    $region9: #{generator_forward.1} parent=1 // pred_fallthru
      _
    // Predicated region
    $region10: #{generator_forward.1} parent=1 // pred_check
      _
    $region11: #{generator_forward.1} parent=1 // pred_check_branch
      %18 = sbr.rel (0) target = $region13
    $region12: #{generator_forward.1} parent=1 // pred_region
      _
    $region13: #{generator_forward.1} parent=1 // pred_fallthru
      _
    // Predicated region
    $region14: #{generator_forward.1} parent=1 // pred_check
      _
    $region15: #{generator_forward.1} parent=1 // pred_check_branch
      %20 = sbr.rel (0) target = $region17
    $region16: #{generator_forward.1} parent=1 // pred_region
      _
    $region17: #{generator_forward.1} parent=1 // pred_fallthru
      _
    // Predicated region
    $region18: #{generator_forward.1} parent=1 // pred_check
      _
    $region19: #{generator_forward.1} parent=1 // pred_check_branch
      %22 = sbr.rel (0) target = $region21
    $region20: #{generator_forward.1} parent=1 // pred_region
      _
    $region21: #{generator_forward.1} parent=1 // pred_fallthru
      _
    // Predicated region
    $region22: #{generator_forward.1} parent=1 // pred_check
      _
    $region23: #{generator_forward.1} parent=1 // pred_check_branch
      %24 = sbr.rel (0) target = $region25
    $region24: #{generator_forward.1} parent=1 // pred_region
      _
    $region25: #{generator_forward.1} parent=1 // pred_fallthru
      _
    // Predicated region
    $region26: #{generator_forward.1} parent=1 // pred_check
      _
    $region27: #{generator_forward.1} parent=1 // pred_check_branch
      %26 = sbr.rel (0) target = $region29
    $region28: #{generator_forward.1} parent=1 // pred_region
      _
    $region29: #{generator_forward.1} parent=1 // pred_fallthru
      _
    %v28 = vld [vmem:[%s0] sm:$0xff]
    %v29 = vld [vmem:[%s0 + $0x8] sm:$0xff]
    %v30 = vpack.c.bf16 %v28, %v28
    %v31 = vpack.c.bf16 %v29, %v29
    %v32 = vld [vmem:[%s1] sm:$0xf]
    %v33 = vld [vmem:[%s1 + $0x4] sm:$0xf]
    %v34 = vld [vmem:[%s1 + $0x8] sm:$0xf]
    %v35 = vld [vmem:[%s1 + $0xc] sm:$0xf]
    %v36 = vld [vmem:[%s1 + $0x10] sm:$0xf]
    %v37 = vld [vmem:[%s1 + $0x14] sm:$0xf]
    %v38 = vld [vmem:[%s1 + $0x18] sm:$0xf]
    %v39 = vld [vmem:[%s1 + $0x1c] sm:$0xf]
    %v40 = vld [vmem:[%s1 + $0x20] sm:$0xf]
    %v41 = vld [vmem:[%s1 + $0x24] sm:$0xf]
    %v42 = vld [vmem:[%s1 + $0x28] sm:$0xf]
    %v43 = vld [vmem:[%s1 + $0x2c] sm:$0xf]
    %v44 = vld [vmem:[%s1 + $0x30] sm:$0xf]
    %v45 = vld [vmem:[%s1 + $0x34] sm:$0xf]
    %v46 = vld [vmem:[%s1 + $0x38] sm:$0xf]
    %v47 = vld [vmem:[%s1 + $0x3c] sm:$0xf]
    %v48 = vld [vmem:[%s1 + $0x40] sm:$0xf]
    %v49 = vld [vmem:[%s1 + $0x44] sm:$0xf]
    %v50 = vld [vmem:[%s1 + $0x48] sm:$0xf]
    %v51 = vld [vmem:[%s1 + $0x4c] sm:$0xf]
    %v52 = vld [vmem:[%s1 + $0x50] sm:$0xf]
    %v53 = vld [vmem:[%s1 + $0x54] sm:$0xf]
    %v54 = vld [vmem:[%s1 + $0x58] sm:$0xf]
    %v55 = vld [vmem:[%s1 + $0x5c] sm:$0xf]
    %v56 = vld [vmem:[%s1 + $0x60] sm:$0xf]
    %v57 = vld [vmem:[%s1 + $0x64] sm:$0xf]
    %v58 = vld [vmem:[%s1 + $0x68] sm:$0xf]
    %v59 = vld [vmem:[%s1 + $0x6c] sm:$0xf]
    %v60 = vld [vmem:[%s1 + $0x70] sm:$0xf]
    %v61 = vld [vmem:[%s1 + $0x74] sm:$0xf]
    %v62 = vld [vmem:[%s1 + $0x78] sm:$0xf]
    %v63 = vld [vmem:[%s1 + $0x7c] sm:$0xf]
    %v64 = vld [vmem:[%s2] sm:$0x1]
    %v66 = vperm.slane %v64, 0
    %v100 = vunpack.c.l.b16 %v32
    %v101 = vunpack.c.l.b16 %v33
    %v102 = vunpack.c.l.b16 %v34
    %v103 = vunpack.c.l.b16 %v35
    %v104 = vunpack.c.l.b16 %v36
    %v105 = vunpack.c.l.b16 %v37
    %v106 = vunpack.c.l.b16 %v38
    %v107 = vunpack.c.l.b16 %v39
    %v108 = vunpack.c.l.b16 %v40
    %v109 = vunpack.c.l.b16 %v41
    %v110 = vunpack.c.l.b16 %v42
    %v111 = vunpack.c.l.b16 %v43
    %v112 = vunpack.c.l.b16 %v44
    %v113 = vunpack.c.l.b16 %v45
    %v114 = vunpack.c.l.b16 %v46
    %v115 = vunpack.c.l.b16 %v47
    %v116 = vunpack.c.l.b16 %v48
    %v117 = vunpack.c.l.b16 %v49
    %v118 = vunpack.c.l.b16 %v50
    %v119 = vunpack.c.l.b16 %v51
    %v120 = vunpack.c.l.b16 %v52
    %v121 = vunpack.c.l.b16 %v53
    %v122 = vunpack.c.l.b16 %v54
    %v123 = vunpack.c.l.b16 %v55
    %v124 = vunpack.c.l.b16 %v56
    %v125 = vunpack.c.l.b16 %v57
    %v126 = vunpack.c.l.b16 %v58
    %v127 = vunpack.c.l.b16 %v59
    %v128 = vunpack.c.l.b16 %v60
    %v129 = vunpack.c.l.b16 %v61
    %v130 = vunpack.c.l.b16 %v62
    %v131 = vunpack.c.l.b16 %v63
    %v132 = vpack.c.b16 %v101, %v100
    %v133 = vpack.c.b16 %v103, %v102
    %v134 = vpack.c.b16 %v105, %v104
    %v135 = vpack.c.b16 %v107, %v106
    %v136 = vpack.c.b16 %v109, %v108
    %v137 = vpack.c.b16 %v111, %v110
    %v138 = vpack.c.b16 %v113, %v112
    %v139 = vpack.c.b16 %v115, %v114
    %v140 = vpack.c.b16 %v117, %v116
    %v141 = vpack.c.b16 %v119, %v118
    %v142 = vpack.c.b16 %v121, %v120
    %v143 = vpack.c.b16 %v123, %v122
    %v144 = vpack.c.b16 %v125, %v124
    %v145 = vpack.c.b16 %v127, %v126
    %v146 = vpack.c.b16 %v129, %v128
    %v147 = vpack.c.b16 %v131, %v130
    %164 = vmatpush.bf16.msra.mxu0 %v139
    %165 = vmatpush.bf16.msra.mxu0 %v138
    %166 = vmatpush.bf16.msra.mxu0 %v137
    %167 = vmatpush.bf16.msra.mxu0 %v136
    %168 = vmatpush.bf16.msra.mxu0 %v135
    %169 = vmatpush.bf16.msra.mxu0 %v134
    %170 = vmatpush.bf16.msra.mxu0 %v133
    %171 = vmatpush.bf16.msra.mxu0 %v132
    %172 = vmatmul.bf16.gmra.mxu0 %v30
    %v173 = vpop.f32.mrf.mxu0
    %v174 = vadd.f32 %v66, %v173
    %v175 = vpop.f32.mrf.mxu0
    %176 = vdwg.mxu0
    %177 = vmatpush.bf16.msra.mxu0 %v147
    %178 = vmatpush.bf16.msra.mxu0 %v146
    %179 = vmatpush.bf16.msra.mxu0 %v145
    %180 = vmatpush.bf16.msra.mxu0 %v144
    %181 = vmatpush.bf16.msra.mxu0 %v143
    %182 = vmatpush.bf16.msra.mxu0 %v142
    %183 = vmatpush.bf16.msra.mxu0 %v141
    %184 = vmatpush.bf16.msra.mxu0 %v140
    %185 = vmatmul.bf16.gmra.mxu0 %v31
    %v186 = vpop.f32.mrf.mxu0
    %v187 = vadd.f32 %v174, %v186
    %v188 = vpop.f32.mrf.mxu0
    %189 = vdwg.mxu0
    %v190 = vtanh.pop %v187
    %v191 = vpack.c.bf16 %v190, %v190
    %v192 = vld [vmem:[%s3] sm:$0xf]
    %v193 = vld [vmem:[%s3 + $0x4] sm:$0xf]
    %v194 = vld [vmem:[%s3 + $0x8] sm:$0xf]
    %v195 = vld [vmem:[%s3 + $0xc] sm:$0xf]
    %v196 = vld [vmem:[%s3 + $0x10] sm:$0xf]
    %v197 = vld [vmem:[%s3 + $0x14] sm:$0xf]
    %v198 = vld [vmem:[%s3 + $0x18] sm:$0xf]
    %v199 = vld [vmem:[%s3 + $0x1c] sm:$0xf]
    %v200 = vld [vmem:[%s3 + $0x20] sm:$0xf]
    %v201 = vld [vmem:[%s3 + $0x24] sm:$0xf]
    %v202 = vld [vmem:[%s3 + $0x28] sm:$0xf]
    %v203 = vld [vmem:[%s3 + $0x2c] sm:$0xf]
    %v204 = vld [vmem:[%s3 + $0x30] sm:$0xf]
    %v205 = vld [vmem:[%s3 + $0x34] sm:$0xf]
    %v206 = vld [vmem:[%s3 + $0x38] sm:$0xf]
    %v207 = vld [vmem:[%s3 + $0x3c] sm:$0xf]
    %v208 = vld [vmem:[%s4] sm:$0x1]
    %v210 = vperm.slane %v208, 0
    %v228 = vunpack.c.l.b16 %v192
    %v229 = vunpack.c.l.b16 %v193
    %v230 = vunpack.c.l.b16 %v194
    %v231 = vunpack.c.l.b16 %v195
    %v232 = vunpack.c.l.b16 %v196
    %v233 = vunpack.c.l.b16 %v197
    %v234 = vunpack.c.l.b16 %v198
    %v235 = vunpack.c.l.b16 %v199
    %v236 = vunpack.c.l.b16 %v200
    %v237 = vunpack.c.l.b16 %v201
    %v238 = vunpack.c.l.b16 %v202
    %v239 = vunpack.c.l.b16 %v203
    %v240 = vunpack.c.l.b16 %v204
    %v241 = vunpack.c.l.b16 %v205
    %v242 = vunpack.c.l.b16 %v206
    %v243 = vunpack.c.l.b16 %v207
    %v244 = vpack.c.b16 %v229, %v228
    %v245 = vpack.c.b16 %v231, %v230
    %v246 = vpack.c.b16 %v233, %v232
    %v247 = vpack.c.b16 %v235, %v234
    %v248 = vpack.c.b16 %v237, %v236
    %v249 = vpack.c.b16 %v239, %v238
    %v250 = vpack.c.b16 %v241, %v240
    %v251 = vpack.c.b16 %v243, %v242
    %260 = vmatpush.bf16.msra.mxu0 %v251
    %261 = vmatpush.bf16.msra.mxu0 %v250
    %262 = vmatpush.bf16.msra.mxu0 %v249
    %263 = vmatpush.bf16.msra.mxu0 %v248
    %264 = vmatpush.bf16.msra.mxu0 %v247
    %265 = vmatpush.bf16.msra.mxu0 %v246
    %266 = vmatpush.bf16.msra.mxu0 %v245
    %267 = vmatpush.bf16.msra.mxu0 %v244
    %268 = vmatmul.bf16.gmra.mxu0 %v191
    %v269 = vpop.f32.mrf.mxu0
    %v270 = vadd.f32 %v210, %v269
    %v271 = vpop.f32.mrf.mxu0
    %272 = vdwg.mxu0
    %v273 = vtanh.pop %v270
    %v274 = vld [vmem:[%s5] sm:$0x1]
    %v275 = vpack.c.bf16 %v273, %v273
    %v276 = vld [vmem:[%s6] sm:$0x3]
    %278 = vset.pattern.permute.xlu0 0
    %279 = vperm.xlu0 %278, %v276
    %v280 = vpop.permute.xlu0 %279
    %282 = vmatpush.bf16.xpose.msra.mxu0 0
    %283 = vmatpush.bf16.xpose.msra.mxu0 0
    %284 = vmatpush.bf16.xpose.msra.mxu0 0
    %285 = vmatpush.bf16.xpose.msra.mxu0 0
    %286 = vmatpush.bf16.xpose.msra.mxu0 0
    %287 = vmatpush.bf16.xpose.msra.mxu0 0
    %288 = vmatpush.bf16.xpose.msra.mxu0 0
    %289 = vmatpush.bf16.xpose.msra.mxu0 %v275
    %290 = vmatmul.bf16.gmra.mxu0 %v274
    %v291 = vpop.f32.mrf.mxu0
    %v292 = vadd.f32 %v280, %v291
    %v293 = vpop.f32.mrf.mxu0
    %294 = vdwg.mxu0
    %vm295 = vcmask 58368
    %296 = vst.msk [vmem:[#allocation2] sm:$0x3] %vm295, %v292
    // Predicated region
    $region30: #{generator_forward.1} parent=1 // pred_check
      _
    $region31: #{generator_forward.1} parent=1 // pred_check_branch
      %298 = sbr.rel (0) target = $region33
    $region32: #{generator_forward.1} parent=1 // pred_region
      %300 = vsyncadd [#allocation3], 0
      %s302 = sshll.u32 [#allocation2], 4
      %s303 = int_to_ptr.vmem [resolvable:$true] %s302
      %s304 = sshll.u32 %s7, 4
      %s305 = int_to_ptr.hbm [resolvable:$true] %s304
      %307 = dma.vmem_to_hbm [thread:$0]  %s303, 32, %s305, [#allocation3]
    $region33: #{generator_forward.1} parent=1 // pred_fallthru
      _
    // Predicated region
    $region34: #{generator_forward.1} parent=1 // pred_check
      _
    $region35: #{generator_forward.1} parent=1 // pred_check_branch
      %309 = sbr.rel (0) target = $region37
    $region36: #{generator_forward.1} parent=1 // pred_region
      %311 = dma.done [#allocation3], 32
    $region37: #{generator_forward.1} parent=1 // pred_fallthru
      _
    %312 = vsyncpa [#allocation3], 1

</llo_original>
